<compile_context>
chip_gen: v6e
topology: v6e:2x2x1
jax: 0.10.0
libtpu: 0.0.40
codegen_flags: <defaults>
</compile_context>

<pallas_src>
import functools

import jax
import jax.numpy as jnp
from jax import lax
from jax.experimental import pallas as pl
from jax.experimental.pallas import tpu as pltpu


def _round_up(x: int, m: int) -> int:
    return ((x + m - 1) // m) * m


def _head_sigmoid_kernel(x_ref, w_ref, b_ref, o_ref):
    # x_ref: [TM, H], w_ref: [2, H] (lane-dense, contracted on H), b_ref: [1, 2]
    # o_ref: [TM, 2]
    logits = lax.dot_general(
        x_ref[...], w_ref[...],
        dimension_numbers=(((1,), (1,)), ((), ())),
        preferred_element_type=jnp.float32,
    )
    logits = logits + b_ref[...]                # broadcast [1, 2] over rows
    o_ref[...] = jax.nn.sigmoid(logits).astype(o_ref.dtype)


@functools.partial(jax.jit, static_argnames=("tm",))
def token_detection_classifier(feature, weight, bias, *, tm: int = 512):
    """feature: [B, S, H] f32; weight: [2, H]; bias: [2] -> [B, S, 2] f32."""
    B, S, H = feature.shape
    M = B * S

    # Tile size: multiple of 8 (sublane constraint), capped so toy shapes don't
    # pad excessively; for production M this stays at `tm` (e.g. 512 rows),
    # which keeps 2x double-buffered tiles well inside scoped VMEM on
    # v5e/v6e/v7x for typical hidden sizes.
    tile_m = min(tm, _round_up(M, 8))
    m_pad = _round_up(M, tile_m)

    x = feature.reshape(M, H).astype(jnp.float32)
    if m_pad != M:
        x = jnp.pad(x, ((0, m_pad - M), (0, 0)))
    w = weight.astype(jnp.float32)              # keep lane-dense [2, H]
    b = bias.reshape(1, 2).astype(jnp.float32)

    grid = (m_pad // tile_m,)

    cost = pl.CostEstimate(
        flops=4 * m_pad * H,                    # matmul: 2 * M * H * N, N = 2
        transcendentals=2 * m_pad,              # sigmoid (exp) per output
        bytes_accessed=m_pad * H * 4 + 2 * H * 4 + 2 * 4 + m_pad * 2 * 4,
    )

    out = pl.pallas_call(
        _head_sigmoid_kernel,
        out_shape=jax.ShapeDtypeStruct((m_pad, 2), jnp.float32),
        grid_spec=pltpu.PrefetchScalarGridSpec(
            num_scalar_prefetch=0,
            grid=grid,
            in_specs=[
                pl.BlockSpec((tile_m, H), lambda i: (i, 0)),  # stream x tiles
                pl.BlockSpec((2, H), lambda i: (0, 0)),       # weight resident
                pl.BlockSpec((1, 2), lambda i: (0, 0)),       # bias resident
            ],
            out_specs=pl.BlockSpec((tile_m, 2), lambda i: (i, 0)),
        ),
        compiler_params=pltpu.CompilerParams(
            dimension_semantics=("parallel",),  # row tiles independent -> 2 TCs on v7x
        ),
        cost_estimate=cost,
    )(x, w, b)

    return out[:M].reshape(B, S, 2)


if __name__ == "__main__":
    key = jax.random.PRNGKey(0)
    k_feat, k_w, k_b = jax.random.split(key, 3)

    B, S, H = 2, 8, 32

    feature = jax.random.normal(k_feat, (B, S, H), dtype=jnp.float32)
    # Deterministic init mimicking nn.Linear(hidden_size, 2) parameter shapes.
    bound = 1.0 / jnp.sqrt(H)
    weight = jax.random.uniform(k_w, (2, H), minval=-bound, maxval=bound,
                                dtype=jnp.float32)
    bias = jax.random.uniform(k_b, (2,), minval=-bound, maxval=bound,
                              dtype=jnp.float32)

    out = token_detection_classifier(feature, weight, bias)
    jax.block_until_ready(out)

    # Reference check in plain JAX.
    ref = jax.nn.sigmoid(feature.reshape(-1, H) @ weight.T + bias).reshape(B, S, 2)
    assert out.shape == (B, S, 2)
    assert jnp.allclose(out, ref, atol=1e-5, rtol=1e-5)

    print("KERNEL_OK")
</pallas_src>

<mosaic_0001>
module attributes {stable_mosaic.version = 11 : i64} {
  func.func @_head_sigmoid_kernel(%arg0: i32, %arg1: memref<16x32xf32, #tpu.memory_space<vmem>>, %arg2: memref<2x32xf32, #tpu.memory_space<vmem>>, %arg3: memref<1x2xf32, #tpu.memory_space<vmem>>, %arg4: memref<16x2xf32, #tpu.memory_space<vmem>>) attributes {dimension_semantics = [#tpu.dimension_semantics<parallel>], iteration_bounds = array<i64: 1>, scalar_prefetch = 0 : i64, scratch_operands = 0 : i64, tpu.core_type = #tpu.core_type<tc>, window_params = [{transform_indices = @transform_0, window_bounds = array<i64: 16, 32>}, {pipeline_mode = #tpu.pipeline_mode<synchronous>, transform_indices = @transform_1, window_bounds = array<i64: 2, 32>}, {pipeline_mode = #tpu.pipeline_mode<synchronous>, transform_indices = @transform_2, window_bounds = array<i64: 1, 2>}, {transform_indices = @transform_3, window_bounds = array<i64: 16, 2>}]} {
    %c0 = arith.constant 0 : index
    %c0_0 = arith.constant 0 : index
    %0 = vector.load %arg1[%c0, %c0_0] : memref<16x32xf32, #tpu.memory_space<vmem>>, vector<16x32xf32>
    %c0_1 = arith.constant 0 : index
    %c0_2 = arith.constant 0 : index
    %1 = vector.load %arg2[%c0_1, %c0_2] : memref<2x32xf32, #tpu.memory_space<vmem>>, vector<2x32xf32>
    %cst = arith.constant dense<0.000000e+00> : vector<16x2xf32>
    %2 = tpu.matmul %0, %1, %cst {dimension_numbers = #tpu.dot_dimension_numbers<[1], [1], [0], [0], [0, 0, 1, 0], [], []>} : vector<16x32xf32>, vector<2x32xf32>, vector<16x2xf32> -> vector<16x2xf32>
    %c0_3 = arith.constant 0 : index
    %c0_4 = arith.constant 0 : index
    %3 = vector.load %arg3[%c0_3, %c0_4] : memref<1x2xf32, #tpu.memory_space<vmem>>, vector<1x2xf32>
    %4 = vector.broadcast %3 : vector<1x2xf32> to vector<16x2xf32>
    %5 = arith.addf %2, %4 : vector<16x2xf32>
    %6 = arith.negf %5 : vector<16x2xf32>
    %7 = math.exp %6 : vector<16x2xf32>
    %cst_5 = arith.constant 1.000000e+00 : f32
    %8 = vector.broadcast %cst_5 : f32 to vector<16x2xf32>
    %9 = arith.addf %8, %7 : vector<16x2xf32>
    %10 = arith.divf %8, %9 : vector<16x2xf32>
    %c0_6 = arith.constant 0 : index
    %c0_7 = arith.constant 0 : index
    %11 = vector.load %arg4[%c0_6, %c0_7] : memref<16x2xf32, #tpu.memory_space<vmem>>, vector<16x2xf32>
    tpu.vector_store %arg4[%c0_6, %c0_7], %10 {strides = array<i32>} : memref<16x2xf32, #tpu.memory_space<vmem>>, vector<16x2xf32>,
    return
  }
  func.func @transform_0(%arg0: i32) -> (i32, i32) {
    %c0_i32 = arith.constant 0 : i32
    %c0_i32_0 = arith.constant 0 : i32
    return %arg0, %c0_i32 : i32, i32
  }
  func.func @transform_1(%arg0: i32) -> (i32, i32) {
    %c0_i32 = arith.constant 0 : i32
    %c0_i32_0 = arith.constant 0 : i32
    %c0_i32_1 = arith.constant 0 : i32
    return %c0_i32, %c0_i32_0 : i32, i32
  }
  func.func @transform_2(%arg0: i32) -> (i32, i32) {
    %c0_i32 = arith.constant 0 : i32
    %c0_i32_0 = arith.constant 0 : i32
    %c0_i32_1 = arith.constant 0 : i32
    return %c0_i32, %c0_i32_0 : i32, i32
  }
  func.func @transform_3(%arg0: i32) -> (i32, i32) {
    %c0_i32 = arith.constant 0 : i32
    %c0_i32_0 = arith.constant 0 : i32
    return %arg0, %c0_i32 : i32, i32
  }
}

</mosaic_0001>

<llo_original>
// kernel: token_detection_classifier.1
$region0: #{token_detection_classifier.1}
  #allocation0 [shape = 'u32[]', space=smem, size = 0x4, offset = 0x4, fixed_abs, tag = 'smem constant byte address 0x4 - core index']
  #allocation1 [shape = 'u32[144,128]{1,0:T(1,128)}', space=vmem, size = 0x12000, scoped, tag = 'internal scratch']
  %s0 = inlined_call_operand.hbm [shape: f32[16,32], index: 0, kind: input, shape index: {}]
  %s1 = inlined_call_operand.vmem [shape: f32[2,32], index: 1, kind: input, shape index: {}]
  %s2 = inlined_call_operand.vmem [shape: f32[1,2], index: 2, kind: input, shape index: {}]
  %s3 = inlined_call_operand.vmem [shape: f32[16,2], index: 3, kind: output, shape index: {}]
  %s4 = sld [smem:[#allocation0]]
  $region26: #{token_detection_classifier.1} parent=0
    _
  %s6 = ssub.s32 1, %s4
  %s7 = scalar_select 0, %s6, %s4
  $region1: #{token_detection_classifier.1} parent=0
    #allocation2 [shape = 'u8[8192]{0}', space=vmem, size = 0x2000, scoped, tag = 'input window, operand 0, single buffered']
    #allocation3 [shape = 's32[1]{0}', space=sflag, size = 0x4, scoped, tag = 'scoped memory for token_detection_classifier.1']
    %8 = vsyncpa [#allocation3], 0
    // Predicated region
    $region2: #{token_detection_classifier.1} parent=1 // pred_check
      _
    $region3: #{token_detection_classifier.1} parent=1 // pred_check_branch
      %10 = sbr.rel (0) target = $region5
    $region4: #{token_detection_classifier.1} parent=1 // pred_region
      %s12 = ssub.s32 256, 256
      %13 = vsyncadd [#allocation3], %s12
      %s14 = sshll.u32 [#allocation2], 4
      %s15 = int_to_ptr.vmem [resolvable:$true] %s14
      %20 = dma.hbm_to_vmem [thread:$0]  %s0, 256, %s15, [#allocation3], 128, 128, 8
    $region5: #{token_detection_classifier.1} parent=1 // pred_fallthru
      _
    // Predicated region
    $region6: #{token_detection_classifier.1} parent=1 // pred_check
      _
    $region7: #{token_detection_classifier.1} parent=1 // pred_check_branch
      %22 = sbr.rel (0) target = $region9
    $region8: #{token_detection_classifier.1} parent=1 // pred_region
      _
    $region9: #{token_detection_classifier.1} parent=1 // pred_fallthru
      _
    // Predicated region
    $region10: #{token_detection_classifier.1} parent=1 // pred_check
      _
    $region11: #{token_detection_classifier.1} parent=1 // pred_check_branch
      %24 = sbr.rel (0) target = $region13
    $region12: #{token_detection_classifier.1} parent=1 // pred_region
      _
    $region13: #{token_detection_classifier.1} parent=1 // pred_fallthru
      _
    // Predicated region
    $region14: #{token_detection_classifier.1} parent=1 // pred_check
      _
    $region15: #{token_detection_classifier.1} parent=1 // pred_check_branch
      %26 = sbr.rel (0) target = $region17
    $region16: #{token_detection_classifier.1} parent=1 // pred_region
      %27 = dma.done [#allocation3], 256
    $region17: #{token_detection_classifier.1} parent=1 // pred_fallthru
      _
    %v28 = vld [vmem:[#allocation2] sm:$0xff]
    %v29 = vld [vmem:[#allocation2 + $0x8] sm:$0xff]
    %v30 = vld [vmem:[%s1] sm:$0x3]
    %v31 = vld [vmem:[%s2] sm:$0x1]
    %v33 = vlaneseq
    %v34 = vshrl.u32 %v33, 7
    %v35 = vsub.s32 0, %v34
    %v36 = vrot.slane %v31, %v35
    %vm38 = vcmask 261120
    %v40 = vsel %vm38, %v28, 0
    %v43 = vsel %vm38, %v29, 0
    %v46 = vsel %vm38, %v30, 0
    %48 = vmatprep.subr.mxu0 0.0
    %49 = vmatpush1.xpose.msra.mxu0 0.0
    %50 = vmatprep.subr.mxu0 0.0
    %51 = vmatpush1.xpose.msra.mxu0 0.0
    %52 = vmatprep.subr.mxu0 0.0
    %53 = vmatpush1.xpose.msra.mxu0 0.0
    %54 = vmatprep.subr.mxu0 0.0
    %55 = vmatpush1.xpose.msra.mxu0 0.0
    %56 = vmatprep.subr.mxu0 0.0
    %57 = vmatpush1.xpose.msra.mxu0 0.0
    %58 = vmatprep.subr.mxu0 0.0
    %59 = vmatpush1.xpose.msra.mxu0 0.0
    %60 = vmatprep.subr.mxu0 0.0
    %61 = vmatpush1.xpose.msra.mxu0 0.0
    %62 = vmatprep.subr.mxu0 0.0
    %63 = vmatpush1.xpose.msra.mxu0 0.0
    %64 = vmatprep.subr.mxu0 0.0
    %65 = vmatpush1.xpose.msra.mxu0 0.0
    %66 = vmatprep.subr.mxu0 0.0
    %67 = vmatpush1.xpose.msra.mxu0 0.0
    %68 = vmatprep.subr.mxu0 0.0
    %69 = vmatpush1.xpose.msra.mxu0 0.0
    %70 = vmatprep.subr.mxu0 0.0
    %71 = vmatpush1.xpose.msra.mxu0 0.0
    %72 = vmatprep.subr.mxu0 0.0
    %73 = vmatpush1.xpose.msra.mxu0 0.0
    %74 = vmatprep.subr.mxu0 0.0
    %75 = vmatpush1.xpose.msra.mxu0 0.0
    %76 = vmatprep.subr.mxu0 0.0
    %77 = vmatpush1.xpose.msra.mxu0 0.0
    %78 = vmatprep.subr.mxu0 0.0
    %79 = vmatpush1.xpose.msra.mxu0 %v46
    %80 = vmatprep.subr.mxu0 0.0
    %81 = vmatpush2.xpose.msra.mxu0 0.0
    %82 = vmatprep.subr.mxu0 0.0
    %83 = vmatpush2.xpose.msra.mxu0 0.0
    %84 = vmatprep.subr.mxu0 0.0
    %85 = vmatpush2.xpose.msra.mxu0 0.0
    %86 = vmatprep.subr.mxu0 0.0
    %87 = vmatpush2.xpose.msra.mxu0 0.0
    %88 = vmatprep.subr.mxu0 0.0
    %89 = vmatpush2.xpose.msra.mxu0 0.0
    %90 = vmatprep.subr.mxu0 0.0
    %91 = vmatpush2.xpose.msra.mxu0 0.0
    %92 = vmatprep.subr.mxu0 0.0
    %93 = vmatpush2.xpose.msra.mxu0 0.0
    %94 = vmatprep.subr.mxu0 0.0
    %95 = vmatpush2.xpose.msra.mxu0 0.0
    %96 = vmatprep.subr.mxu0 0.0
    %97 = vmatpush2.xpose.msra.mxu0 0.0
    %98 = vmatprep.subr.mxu0 0.0
    %99 = vmatpush2.xpose.msra.mxu0 0.0
    %100 = vmatprep.subr.mxu0 0.0
    %101 = vmatpush2.xpose.msra.mxu0 0.0
    %102 = vmatprep.subr.mxu0 0.0
    %103 = vmatpush2.xpose.msra.mxu0 0.0
    %104 = vmatprep.subr.mxu0 0.0
    %105 = vmatpush2.xpose.msra.mxu0 0.0
    %106 = vmatprep.subr.mxu0 0.0
    %107 = vmatpush2.xpose.msra.mxu0 0.0
    %108 = vmatprep.subr.mxu0 0.0
    %109 = vmatpush2.xpose.msra.mxu0 0.0
    %110 = vmatprep.subr.mxu0 0.0
    %111 = vmatpush2.xpose.msra.mxu0 0.0
    %112 = vmatprep.mubr.f32.mxu0 0.0
    %113 = vmatmul.mubr.f32.gmra.mxu0 %v40
    %v114 = vpop.f32.mrf.mxu0
    %v115 = vadd.f32 %v36, %v114
    %v116 = vpop.f32.mrf.mxu0
    %117 = vmatprep.mubr.f32.mxu0 0.0
    %118 = vmatmul.mubr.f32.gmra.mxu0 %v43
    %v119 = vpop.f32.mrf.mxu0
    %v120 = vadd.f32 %v36, %v119
    %v121 = vpop.f32.mrf.mxu0
    %122 = vdwg.mxu0
    %v123 = vxor.u32 %v115, 2147483648
    %v124 = vxor.u32 %v120, 2147483648
    %v125 = vmul.f32 %v123, 1.442695
    %v126 = vpow.pop %v125
    %v127 = vmul.f32 %v124, 1.442695
    %v128 = vpow.pop %v127
    %v129 = vadd.f32 %v126, 1.0
    %v130 = vadd.f32 %v128, 1.0
    %v131 = vrcp.pop %v129
    %v132 = vmul.f32 1.0, %v131
    %v133 = vrcp.pop %v130
    %v134 = vmul.f32 1.0, %v133
    %vm135 = vcmask 15360
    %136 = vst.msk [vmem:[%s3] sm:$0xff] %vm135, %v132
    %137 = vst.msk [vmem:[%s3 + $0x8] sm:$0xff] %vm135, %v134
    // Predicated region
    $region18: #{token_detection_classifier.1} parent=1 // pred_check
      _
    $region19: #{token_detection_classifier.1} parent=1 // pred_check_branch
      %139 = sbr.rel (0) target = $region21
    $region20: #{token_detection_classifier.1} parent=1 // pred_region
      _
    $region21: #{token_detection_classifier.1} parent=1 // pred_fallthru
      _
    // Predicated region
    $region22: #{token_detection_classifier.1} parent=1 // pred_check
      _
    $region23: #{token_detection_classifier.1} parent=1 // pred_check_branch
      %141 = sbr.rel (0) target = $region25
    $region24: #{token_detection_classifier.1} parent=1 // pred_region
      _
    $region25: #{token_detection_classifier.1} parent=1 // pred_fallthru
      _
    %142 = vsyncpa [#allocation3], 1

</llo_original>
